<compile_context>
chip_gen: v7x
topology: tpu7x:2x2x1
jax: 0.10.0
libtpu: 0.0.40
codegen_flags: <defaults>
</compile_context>

<pallas_src>
import functools

import jax
import jax.numpy as jnp
from jax.experimental import pallas as pl
from jax.experimental.pallas import tpu as pltpu


def _cosine_sim_kernel(x_ref, y_ref, o_ref, dot_acc, sx_acc, sy_acc, *, feat, block_d):
    """x_ref/y_ref: (TB, TD) row-major tiles; o_ref: (TB, 1) output column."""
    k = pl.program_id(1)  # reduction step over the feature dim (last grid axis)

    @pl.when(k == 0)
    def _init():
        dot_acc[...] = jnp.zeros_like(dot_acc)
        sx_acc[...] = jnp.zeros_like(sx_acc)
        sy_acc[...] = jnp.zeros_like(sy_acc)

    # Widen in-register only; the DMA stays in the source dtype.
    x = x_ref[...].astype(jnp.float32)
    y = y_ref[...].astype(jnp.float32)

    if feat % block_d != 0:
        # The last feature block reads past D; zero the tail lanes so garbage
        # never contributes to valid rows' sums. (Trace-time conditional: the
        # mask code is only emitted when the feature dim doesn't tile evenly.)
        lane = jax.lax.broadcasted_iota(jnp.int32, x.shape, 1)
        valid = lane < (feat - k * block_d)
        x = jnp.where(valid, x, 0.0)
        y = jnp.where(valid, y, 0.0)

    # Per-row partial sums over the feature (lane) axis -> (TB, 1).
    dot_acc[...] += jnp.sum(x * y, axis=1, keepdims=True)
    sx_acc[...] += jnp.sum(x * x, axis=1, keepdims=True)
    sy_acc[...] += jnp.sum(y * y, axis=1, keepdims=True)

    @pl.when(k == pl.num_programs(1) - 1)
    def _finalize():
        # PyTorch F.cosine_similarity clamps each norm at eps=1e-8:
        #   max(sqrt(s), eps) == sqrt(max(s, eps**2))  (sqrt is monotonic),
        # so clamping the squared norms at eps^2 and using rsqrt (EUP slot,
        # off the VALU critical path) is numerically equivalent.
        eps2 = jnp.float32(1e-16)
        inv = jax.lax.rsqrt(jnp.maximum(sx_acc[...], eps2)) * jax.lax.rsqrt(
            jnp.maximum(sy_acc[...], eps2)
        )
        o_ref[...] = (dot_acc[...] * inv).astype(o_ref.dtype)


def _choose_tiles(B, D, itemsize, target_tile_bytes=2 << 20):
    """Pick (block_b, block_d): batch rows (sublanes, mult of 8), features (lanes).

    Budget ~2 MiB per input tile (counting lane padding to 128), so
    2 inputs x 2 pipeline buffers stay well under the scoped-VMEM default on
    every TPU generation (16 MiB v5e .. 32 MiB v6e/v7x).
    """
    lane_pad = pl.cdiv(D, 128) * 128
    row_bytes = lane_pad * itemsize
    if 8 * row_bytes <= target_tile_bytes:
        # Common case: keep the full feature dim in one block (contiguous DMAs,
        # single reduction step) and make the batch block as tall as fits.
        block_d = D
        block_b = (target_tile_bytes // row_bytes) // 8 * 8
        block_b = max(8, min(block_b, pl.cdiv(B, 8) * 8))
    else:
        # Very large feature dim: minimal batch block, split D in 128-lane chunks.
        block_b = 8
        block_d = (target_tile_bytes // (8 * itemsize)) // 128 * 128
        block_d = max(128, min(block_d, lane_pad))
    return int(block_b), int(block_d)


@functools.partial(jax.jit, static_argnames=("block_b", "block_d"))
def similarity_module(x, y, *, block_b=None, block_d=None):
    """Equivalent of SimilarityModule(net_dropout=0.0).forward(x, y).

    x, y: (B, D) arrays. Returns (B, 1) float32 cosine similarities.
    """
    assert x.shape == y.shape and x.ndim == 2
    B, D = x.shape
    itemsize = jnp.dtype(x.dtype).itemsize

    auto_b, auto_d = _choose_tiles(B, D, itemsize)
    tb = int(block_b) if block_b is not None else auto_b
    td = int(block_d) if block_d is not None else auto_d

    num_b = pl.cdiv(B, tb)
    num_k = pl.cdiv(D, td)

    kernel = functools.partial(_cosine_sim_kernel, feat=D, block_d=td)

    out = pl.pallas_call(
        kernel,
        out_shape=jax.ShapeDtypeStruct((B, 1), jnp.float32),
        grid_spec=pltpu.PrefetchScalarGridSpec(
            num_scalar_prefetch=0,
            grid=(num_b, num_k),  # reduction axis last (convention)
            in_specs=[
                pl.BlockSpec((tb, td), lambda i, k: (i, k)),
                pl.BlockSpec((tb, td), lambda i, k: (i, k)),
            ],
            out_specs=pl.BlockSpec((tb, 1), lambda i, k: (i, 0)),
            scratch_shapes=[pltpu.VMEM((tb, 1), jnp.float32)] * 3,
        ),
        compiler_params=pltpu.CompilerParams(
            # Batch tiles are independent -> megacore-shardable on v7x;
            # feature axis carries the accumulators -> arbitrary.
            dimension_semantics=("parallel", "arbitrary"),
        ),
    )(x, y)

    return out


def _reference(x, y):
    eps = 1e-8
    dot = jnp.sum(x * y, axis=1, keepdims=True)
    nx = jnp.maximum(jnp.linalg.norm(x, axis=1, keepdims=True), eps)
    ny = jnp.maximum(jnp.linalg.norm(y, axis=1, keepdims=True), eps)
    return dot / (nx * ny)


if __name__ == "__main__":
    key = jax.random.PRNGKey(0)
    kx, ky = jax.random.split(key)

    # Small shapes consistent with the module (user/item embedding vectors).
    B, D = 16, 32
    x = jax.random.normal(kx, (B, D), dtype=jnp.float32)
    y = jax.random.normal(ky, (B, D), dtype=jnp.float32)
    out = jax.block_until_ready(similarity_module(x, y))
    ref = _reference(x, y)
    assert out.shape == (B, 1)
    assert jnp.allclose(out, ref, atol=1e-5, rtol=1e-4)

    # Exercise partial batch blocks, multiple batch tiles, the D-reduction axis
    # and the masked partial last feature block (forced small blocks so the
    # path is covered at modest sizes).
    B2, D2 = 200, 300
    x2 = jax.random.normal(ky, (B2, D2), dtype=jnp.float32)
    y2 = jax.random.normal(kx, (B2, D2), dtype=jnp.float32)
    out2 = jax.block_until_ready(
        similarity_module(x2, y2, block_b=64, block_d=128)
    )
    ref2 = _reference(x2, y2)
    assert out2.shape == (B2, 1)
    assert jnp.allclose(out2, ref2, atol=1e-5, rtol=1e-4)

    # TODO(synk): nn.Dropout path (net_dropout > 0) not implemented; module default (0.0) makes it a no-op.
    print("KERNEL_OK")
</pallas_src>

<mosaic_0001>
module attributes {stable_mosaic.version = 11 : i64} {
  func.func @_cosine_sim_kernel(%arg0: i32, %arg1: i32, %arg2: memref<16x32xf32, #tpu.memory_space<vmem>>, %arg3: memref<16x32xf32, #tpu.memory_space<vmem>>, %arg4: memref<16x1xf32, #tpu.memory_space<vmem>>, %arg5: memref<16x1xf32, #tpu.memory_space<vmem>>, %arg6: memref<16x1xf32, #tpu.memory_space<vmem>>, %arg7: memref<16x1xf32, #tpu.memory_space<vmem>>) attributes {dimension_semantics = [#tpu.dimension_semantics<parallel>, #tpu.dimension_semantics<arbitrary>], iteration_bounds = array<i64: 1, 1>, scalar_prefetch = 0 : i64, scratch_operands = 3 : i64, tpu.core_type = #tpu.core_type<tc>, window_params = [{transform_indices = @transform_0, window_bounds = array<i64: 16, 32>}, {transform_indices = @transform_1, window_bounds = array<i64: 16, 32>}, {transform_indices = @transform_2, window_bounds = array<i64: 16, 1>}]} {
    %c0_i32 = arith.constant 0 : i32
    %0 = arith.cmpi eq, %arg1, %c0_i32 : i32
    %1 = arith.extui %0 : i1 to i32
    %c0_i32_0 = arith.constant 0 : i32
    %2 = arith.cmpi ne, %1, %c0_i32_0 : i32
    scf.if %2 {
      %cst_20 = arith.constant 0.000000e+00 : f32
      %26 = vector.broadcast %cst_20 : f32 to vector<16x1xf32>
      %c0_21 = arith.constant 0 : index
      %c0_22 = arith.constant 0 : index
      %27 = vector.load %arg5[%c0_21, %c0_22] : memref<16x1xf32, #tpu.memory_space<vmem>>, vector<16x1xf32>
      tpu.vector_store %arg5[%c0_21, %c0_22], %26 {strides = array<i32>} : memref<16x1xf32, #tpu.memory_space<vmem>>, vector<16x1xf32>,
      %cst_23 = arith.constant 0.000000e+00 : f32
      %28 = vector.broadcast %cst_23 : f32 to vector<16x1xf32>
      %c0_24 = arith.constant 0 : index
      %c0_25 = arith.constant 0 : index
      %29 = vector.load %arg6[%c0_24, %c0_25] : memref<16x1xf32, #tpu.memory_space<vmem>>, vector<16x1xf32>
      tpu.vector_store %arg6[%c0_24, %c0_25], %28 {strides = array<i32>} : memref<16x1xf32, #tpu.memory_space<vmem>>, vector<16x1xf32>,
      %cst_26 = arith.constant 0.000000e+00 : f32
      %30 = vector.broadcast %cst_26 : f32 to vector<16x1xf32>
      %c0_27 = arith.constant 0 : index
      %c0_28 = arith.constant 0 : index
      %31 = vector.load %arg7[%c0_27, %c0_28] : memref<16x1xf32, #tpu.memory_space<vmem>>, vector<16x1xf32>
      tpu.vector_store %arg7[%c0_27, %c0_28], %30 {strides = array<i32>} : memref<16x1xf32, #tpu.memory_space<vmem>>, vector<16x1xf32>,
    } else {
    }
    %c0 = arith.constant 0 : index
    %c0_1 = arith.constant 0 : index
    %3 = vector.load %arg2[%c0, %c0_1] : memref<16x32xf32, #tpu.memory_space<vmem>>, vector<16x32xf32>
    %c0_2 = arith.constant 0 : index
    %c0_3 = arith.constant 0 : index
    %4 = vector.load %arg3[%c0_2, %c0_3] : memref<16x32xf32, #tpu.memory_space<vmem>>, vector<16x32xf32>
    %c0_4 = arith.constant 0 : index
    %c0_5 = arith.constant 0 : index
    %5 = vector.load %arg5[%c0_4, %c0_5] : memref<16x1xf32, #tpu.memory_space<vmem>>, vector<16x1xf32>
    %6 = arith.mulf %3, %4 : vector<16x32xf32>
    %cst = arith.constant dense<0.000000e+00> : vector<16xf32>
    %7 = vector.multi_reduction <add>, %6, %cst [1] : vector<16x32xf32> to vector<16xf32>
    %8 = vector.shape_cast %7 : vector<16xf32> to vector<16x1xf32>
    %9 = arith.addf %5, %8 : vector<16x1xf32>
    %c0_6 = arith.constant 0 : index
    %c0_7 = arith.constant 0 : index
    %10 = vector.load %arg5[%c0_6, %c0_7] : memref<16x1xf32, #tpu.memory_space<vmem>>, vector<16x1xf32>
    tpu.vector_store %arg5[%c0_6, %c0_7], %9 {strides = array<i32>} : memref<16x1xf32, #tpu.memory_space<vmem>>, vector<16x1xf32>,
    %c0_8 = arith.constant 0 : index
    %c0_9 = arith.constant 0 : index
    %11 = vector.load %arg6[%c0_8, %c0_9] : memref<16x1xf32, #tpu.memory_space<vmem>>, vector<16x1xf32>
    %12 = arith.mulf %3, %3 : vector<16x32xf32>
    %cst_10 = arith.constant dense<0.000000e+00> : vector<16xf32>
    %13 = vector.multi_reduction <add>, %12, %cst_10 [1] : vector<16x32xf32> to vector<16xf32>
    %14 = vector.shape_cast %13 : vector<16xf32> to vector<16x1xf32>
    %15 = arith.addf %11, %14 : vector<16x1xf32>
    %c0_11 = arith.constant 0 : index
    %c0_12 = arith.constant 0 : index
    %16 = vector.load %arg6[%c0_11, %c0_12] : memref<16x1xf32, #tpu.memory_space<vmem>>, vector<16x1xf32>
    tpu.vector_store %arg6[%c0_11, %c0_12], %15 {strides = array<i32>} : memref<16x1xf32, #tpu.memory_space<vmem>>, vector<16x1xf32>,
    %c0_13 = arith.constant 0 : index
    %c0_14 = arith.constant 0 : index
    %17 = vector.load %arg7[%c0_13, %c0_14] : memref<16x1xf32, #tpu.memory_space<vmem>>, vector<16x1xf32>
    %18 = arith.mulf %4, %4 : vector<16x32xf32>
    %cst_15 = arith.constant dense<0.000000e+00> : vector<16xf32>
    %19 = vector.multi_reduction <add>, %18, %cst_15 [1] : vector<16x32xf32> to vector<16xf32>
    %20 = vector.shape_cast %19 : vector<16xf32> to vector<16x1xf32>
    %21 = arith.addf %17, %20 : vector<16x1xf32>
    %c0_16 = arith.constant 0 : index
    %c0_17 = arith.constant 0 : index
    %22 = vector.load %arg7[%c0_16, %c0_17] : memref<16x1xf32, #tpu.memory_space<vmem>>, vector<16x1xf32>
    tpu.vector_store %arg7[%c0_16, %c0_17], %21 {strides = array<i32>} : memref<16x1xf32, #tpu.memory_space<vmem>>, vector<16x1xf32>,
    %c0_i32_18 = arith.constant 0 : i32
    %23 = arith.cmpi eq, %arg1, %c0_i32_18 : i32
    %24 = arith.extui %23 : i1 to i32
    %c0_i32_19 = arith.constant 0 : i32
    %25 = arith.cmpi ne, %24, %c0_i32_19 : i32
    scf.if %25 {
      %c0_20 = arith.constant 0 : index
      %c0_21 = arith.constant 0 : index
      %26 = vector.load %arg6[%c0_20, %c0_21] : memref<16x1xf32, #tpu.memory_space<vmem>>, vector<16x1xf32>
      %cst_22 = arith.constant 1.000000e-16 : f32
      %27 = vector.broadcast %cst_22 : f32 to vector<16x1xf32>
      %28 = arith.maximumf %26, %27 : vector<16x1xf32>
      %29 = math.rsqrt %28 : vector<16x1xf32>
      %c0_23 = arith.constant 0 : index
      %c0_24 = arith.constant 0 : index
      %30 = vector.load %arg7[%c0_23, %c0_24] : memref<16x1xf32, #tpu.memory_space<vmem>>, vector<16x1xf32>
      %cst_25 = arith.constant 1.000000e-16 : f32
      %31 = vector.broadcast %cst_25 : f32 to vector<16x1xf32>
      %32 = arith.maximumf %30, %31 : vector<16x1xf32>
      %33 = math.rsqrt %32 : vector<16x1xf32>
      %34 = arith.mulf %29, %33 : vector<16x1xf32>
      %c0_26 = arith.constant 0 : index
      %c0_27 = arith.constant 0 : index
      %35 = vector.load %arg5[%c0_26, %c0_27] : memref<16x1xf32, #tpu.memory_space<vmem>>, vector<16x1xf32>
      %36 = arith.mulf %35, %34 : vector<16x1xf32>
      %c0_28 = arith.constant 0 : index
      %c0_29 = arith.constant 0 : index
      %37 = vector.load %arg4[%c0_28, %c0_29] : memref<16x1xf32, #tpu.memory_space<vmem>>, vector<16x1xf32>
      tpu.vector_store %arg4[%c0_28, %c0_29], %36 {strides = array<i32>} : memref<16x1xf32, #tpu.memory_space<vmem>>, vector<16x1xf32>,
    } else {
    }
    return
  }
  func.func @transform_0(%arg0: i32, %arg1: i32) -> (i32, i32) {
    %c0_i32 = arith.constant 0 : i32
    return %arg0, %arg1 : i32, i32
  }
  func.func @transform_1(%arg0: i32, %arg1: i32) -> (i32, i32) {
    %c0_i32 = arith.constant 0 : i32
    return %arg0, %arg1 : i32, i32
  }
  func.func @transform_2(%arg0: i32, %arg1: i32) -> (i32, i32) {
    %c0_i32 = arith.constant 0 : i32
    %c0_i32_0 = arith.constant 0 : i32
    return %arg0, %c0_i32 : i32, i32
  }
}

</mosaic_0001>

<llo_original>
// kernel: similarity_module.1
$region0: #{similarity_module.1}
  #allocation0 [shape = 'u32[]', space=smem, size = 0x4, offset = 0x4, fixed_abs, tag = 'smem constant byte address 0x4 - core index']
  #allocation1 [shape = 'u32[144,128]{1,0:T(1,128)}', space=vmem, size = 0x12000, scoped, tag = 'internal scratch']
  #allocation2 [shape = 'f32[16,1]{1,0:T(8,128)}', space=vmem, size = 0x2000, scoped, tag = 'scratch operand']
  #allocation3 [shape = 'f32[16,1]{1,0:T(8,128)}', space=vmem, size = 0x2000, scoped, tag = 'scratch operand']
  #allocation4 [shape = 'f32[16,1]{1,0:T(8,128)}', space=vmem, size = 0x2000, scoped, tag = 'scratch operand']
  %s0 = inlined_call_operand.hbm [shape: f32[16,32], index: 0, kind: input, shape index: {}]
  %s1 = inlined_call_operand.hbm [shape: f32[16,32], index: 1, kind: input, shape index: {}]
  %s2 = inlined_call_operand.vmem [shape: f32[16,1], index: 2, kind: output, shape index: {}]
  %s3 = sld [smem:[#allocation0]]
  $region34: #{similarity_module.1} parent=0
    _
  %s5 = ssub.s32 1, %s3
  %s6 = scalar_select 0, %s5, %s3
  $region1: #{similarity_module.1} parent=0
    #allocation5 [shape = 'u8[8192]{0}', space=vmem, size = 0x2000, scoped, tag = 'input window, operand 0, single buffered']
    #allocation6 [shape = 's32[1]{0}', space=sflag, size = 0x4, scoped, tag = 'scoped memory for similarity_module.1']
    #allocation7 [shape = 'u8[8192]{0}', space=vmem, size = 0x2000, scoped, tag = 'input window, operand 1, single buffered']
    #allocation8 [shape = 's32[1]{0}', space=sflag, size = 0x4, scoped, tag = 'scoped memory for similarity_module.1']
    %7 = vsyncpa [#allocation6], 0
    %8 = vsyncpa [#allocation8], 0
    // Predicated region
    $region2: #{similarity_module.1} parent=1 // pred_check
      _
    $region3: #{similarity_module.1} parent=1 // pred_check_branch
      %10 = sbr.rel (0) target = $region5
    $region4: #{similarity_module.1} parent=1 // pred_region
      %s12 = ssub.s32 256, 256
      %13 = vsyncadd [#allocation6], %s12
      %s14 = sshll.u32 [#allocation5], 4
      %s15 = int_to_ptr.vmem [resolvable:$true] %s14
      %20 = dma.hbm_to_vmem [thread:$0]  %s0, 256, %s15, [#allocation6], 128, 128, 8
    $region5: #{similarity_module.1} parent=1 // pred_fallthru
      _
    // Predicated region
    $region6: #{similarity_module.1} parent=1 // pred_check
      _
    $region7: #{similarity_module.1} parent=1 // pred_check_branch
      %22 = sbr.rel (0) target = $region9
    $region8: #{similarity_module.1} parent=1 // pred_region
      %s24 = ssub.s32 256, 256
      %25 = vsyncadd [#allocation8], %s24
      %s26 = sshll.u32 [#allocation7], 4
      %s27 = int_to_ptr.vmem [resolvable:$true] %s26
      %32 = dma.hbm_to_vmem [thread:$0]  %s1, 256, %s27, [#allocation8], 128, 128, 8
    $region9: #{similarity_module.1} parent=1 // pred_fallthru
      _
    // Predicated region
    $region10: #{similarity_module.1} parent=1 // pred_check
      _
    $region11: #{similarity_module.1} parent=1 // pred_check_branch
      %34 = sbr.rel (0) target = $region13
    $region12: #{similarity_module.1} parent=1 // pred_region
      %35 = dma.done [#allocation6], 256
    $region13: #{similarity_module.1} parent=1 // pred_fallthru
      _
    // Predicated region
    $region14: #{similarity_module.1} parent=1 // pred_check
      _
    $region15: #{similarity_module.1} parent=1 // pred_check_branch
      %37 = sbr.rel (0) target = $region17
    $region16: #{similarity_module.1} parent=1 // pred_region
      %38 = dma.done [#allocation8], 256
    $region17: #{similarity_module.1} parent=1 // pred_fallthru
      _
    %p39 = scmp.eq.s32.totalorder 0, 0
    // Predicated region
    $region18: #{similarity_module.1} parent=1 // pred_check
      %p40 = pneg %p39
    $region19: #{similarity_module.1} parent=1 // pred_check_branch
      %42 = sbr.rel (%p40) target = $region21
    $region20: #{similarity_module.1} parent=1 // pred_region
      %vm43 = vcmask 7168
      %44 = vst.msk [vmem:[#allocation2] sm:$0xff] %vm43, 0.0
      %45 = vst.msk [vmem:[#allocation2 + $0x8] sm:$0xff] %vm43, 0.0
      %46 = vst.msk [vmem:[#allocation3] sm:$0xff] %vm43, 0.0
      %47 = vst.msk [vmem:[#allocation3 + $0x8] sm:$0xff] %vm43, 0.0
      %48 = vst.msk [vmem:[#allocation4] sm:$0xff] %vm43, 0.0
      %49 = vst.msk [vmem:[#allocation4 + $0x8] sm:$0xff] %vm43, 0.0
    $region21: #{similarity_module.1} parent=1 // pred_fallthru
      _
    %v50 = vld [vmem:[#allocation5] sm:$0xff]
    %v51 = vld [vmem:[#allocation5 + $0x8] sm:$0xff]
    %v52 = vld [vmem:[#allocation7] sm:$0xff]
    %v53 = vld [vmem:[#allocation7 + $0x8] sm:$0xff]
    %v54 = vld [vmem:[#allocation2] sm:$0xff]
    %v55 = vld [vmem:[#allocation2 + $0x8] sm:$0xff]
    %v56 = vmul.f32 %v50, %v52
    %v57 = vmul.f32 %v51, %v53
    %vm58 = vcmask 261120
    %v59 = vsel %vm58, %v56, 0.0
    %60 = vadd.xlane.f32.xlu0 %v59
    %v61 = vpop.xlane.xlu0 %60
    %v62 = vsel %vm58, %v57, 0.0
    %63 = vadd.xlane.f32.xlu0 %v62
    %v64 = vpop.xlane.xlu0 %63
    %v65 = vadd.f32 %v54, %v61
    %v66 = vadd.f32 %v55, %v64
    %vm67 = vcmask 7168
    %68 = vst.msk [vmem:[#allocation2] sm:$0xff] %vm67, %v65
    %69 = vst.msk [vmem:[#allocation2 + $0x8] sm:$0xff] %vm67, %v66
    %v70 = vld [vmem:[#allocation3] sm:$0xff]
    %v71 = vld [vmem:[#allocation3 + $0x8] sm:$0xff]
    %v72 = vmul.f32 %v50, %v50
    %v73 = vmul.f32 %v51, %v51
    %v74 = vsel %vm58, %v72, 0.0
    %75 = vadd.xlane.f32.xlu0 %v74
    %v76 = vpop.xlane.xlu0 %75
    %v77 = vsel %vm58, %v73, 0.0
    %78 = vadd.xlane.f32.xlu0 %v77
    %v79 = vpop.xlane.xlu0 %78
    %v80 = vadd.f32 %v70, %v76
    %v81 = vadd.f32 %v71, %v79
    %82 = vst.msk [vmem:[#allocation3] sm:$0xff] %vm67, %v80
    %83 = vst.msk [vmem:[#allocation3 + $0x8] sm:$0xff] %vm67, %v81
    %v84 = vld [vmem:[#allocation4] sm:$0xff]
    %v85 = vld [vmem:[#allocation4 + $0x8] sm:$0xff]
    %v86 = vmul.f32 %v52, %v52
    %v87 = vmul.f32 %v53, %v53
    %v88 = vsel %vm58, %v86, 0.0
    %89 = vadd.xlane.f32.xlu0 %v88
    %v90 = vpop.xlane.xlu0 %89
    %v91 = vsel %vm58, %v87, 0.0
    %92 = vadd.xlane.f32.xlu0 %v91
    %v93 = vpop.xlane.xlu0 %92
    %v94 = vadd.f32 %v84, %v90
    %v95 = vadd.f32 %v85, %v93
    %96 = vst.msk [vmem:[#allocation4] sm:$0xff] %vm67, %v94
    %97 = vst.msk [vmem:[#allocation4 + $0x8] sm:$0xff] %vm67, %v95
    // Predicated region
    $region22: #{similarity_module.1} parent=1 // pred_check
      %p98 = pneg %p39
    $region23: #{similarity_module.1} parent=1 // pred_check_branch
      %100 = sbr.rel (%p98) target = $region25
    $region24: #{similarity_module.1} parent=1 // pred_region
      %v101 = vld [vmem:[#allocation3] sm:$0xff]
      %v102 = vld [vmem:[#allocation3 + $0x8] sm:$0xff]
      %v103 = vmax.f32 %v101, 1e-16
      %v104 = vmax.f32 %v102, 1e-16
      %v105 = vrsqrt.pop %v103
      %v106 = vrsqrt.pop %v104
      %v107 = vld [vmem:[#allocation4] sm:$0xff]
      %v108 = vld [vmem:[#allocation4 + $0x8] sm:$0xff]
      %v109 = vmax.f32 %v107, 1e-16
      %v110 = vmax.f32 %v108, 1e-16
      %v111 = vrsqrt.pop %v109
      %v112 = vrsqrt.pop %v110
      %v113 = vmul.f32 %v105, %v111
      %v114 = vmul.f32 %v106, %v112
      %v115 = vld [vmem:[#allocation2] sm:$0xff]
      %v116 = vld [vmem:[#allocation2 + $0x8] sm:$0xff]
      %v117 = vmul.f32 %v115, %v113
      %v118 = vmul.f32 %v116, %v114
      %119 = vst.msk [vmem:[%s2] sm:$0xff] %vm67, %v117
      %120 = vst.msk [vmem:[%s2 + $0x8] sm:$0xff] %vm67, %v118
    $region25: #{similarity_module.1} parent=1 // pred_fallthru
      _
    // Predicated region
    $region26: #{similarity_module.1} parent=1 // pred_check
      _
    $region27: #{similarity_module.1} parent=1 // pred_check_branch
      %122 = sbr.rel (0) target = $region29
    $region28: #{similarity_module.1} parent=1 // pred_region
      _
    $region29: #{similarity_module.1} parent=1 // pred_fallthru
      _
    // Predicated region
    $region30: #{similarity_module.1} parent=1 // pred_check
      _
    $region31: #{similarity_module.1} parent=1 // pred_check_branch
      %124 = sbr.rel (0) target = $region33
    $region32: #{similarity_module.1} parent=1 // pred_region
      _
    $region33: #{similarity_module.1} parent=1 // pred_fallthru
      _
    %125 = vsyncpa [#allocation6], 1
    %126 = vsyncpa [#allocation8], 1

</llo_original>
